<compile_context>
chip_gen: v6e
topology: v6e:2x2x1
jax: 0.10.0
libtpu: 0.0.40
codegen_flags: <defaults>
</compile_context>

<pallas_src>
import functools

import jax
import jax.numpy as jnp
from jax import lax
from jax.experimental import pallas as pl
from jax.experimental.pallas import tpu as pltpu


def _round_up(x: int, m: int) -> int:
    return ((x + m - 1) // m) * m


def _gaussian_1d(filter_size: int, filter_sigma: float) -> jnp.ndarray:
    """1D Gaussian window (filter_size,), sums to 1 (stand-in for make_ssim_kernel)."""
    coords = jnp.arange(filter_size, dtype=jnp.float32) - (filter_size - 1) / 2.0
    g = jnp.exp(-(coords ** 2) / (2.0 * filter_sigma ** 2))
    return g / jnp.sum(g)


def make_ssim_filter(filter_size: int, filter_sigma: float) -> jnp.ndarray:
    """2D Gaussian window (fs, fs), sums to 1 (used by the pure-JAX reference)."""
    g = _gaussian_1d(filter_size, filter_sigma)
    return jnp.outer(g, g)


def _toeplitz_band(g: jnp.ndarray, n_in: int, fs: int) -> jnp.ndarray:
    """Banded Toeplitz (n_out, n_in) with G[i, j] = g[j - i] for 0 <= j - i < fs."""
    n_out = n_in - fs + 1
    i = jnp.arange(n_out, dtype=jnp.int32)[:, None]
    j = jnp.arange(n_in, dtype=jnp.int32)[None, :]
    d = j - i
    valid = (d >= 0) & (d < fs)
    return jnp.where(valid, g[jnp.clip(d, 0, fs - 1)], 0.0).astype(jnp.float32)


def _block_channel_gw(gw: jnp.ndarray, C: int, W: int, Wo: int) -> jnp.ndarray:
    """(C*W, C*Wo): Gw (W, Wo) repeated block-diagonally over channels."""
    out = jnp.zeros((C * W, C * Wo), jnp.float32)
    for c in range(C):
        out = out.at[c * W:(c + 1) * W, c * Wo:(c + 1) * Wo].set(gw)
    return out


def _block_map_gh(gh: jnp.ndarray, n_maps: int, Hp: int, Hop: int) -> jnp.ndarray:
    """(n_maps*Hop, n_maps*Hp): Gh (Ho, H), zero-padded to (Hop, Hp), block-diag over maps."""
    Ho, H = gh.shape
    blk = jnp.zeros((Hop, Hp), jnp.float32).at[:Ho, :H].set(gh)
    out = jnp.zeros((n_maps * Hop, n_maps * Hp), jnp.float32)
    for m in range(n_maps):
        out = out.at[m * Hop:(m + 1) * Hop, m * Hp:(m + 1) * Hp].set(blk)
    return out


def _channel_mean_matrix(C: int, Wo: int, Ho: int, Cp: int) -> jnp.ndarray:
    """(C*Wo, Cp): sums channel-c lanes into output lane c with a 1/(Ho*Wo) scale."""
    out = jnp.zeros((C * Wo, Cp), jnp.float32)
    scale = 1.0 / float(Ho * Wo)
    for c in range(C):
        out = out.at[c * Wo:(c + 1) * Wo, c].set(scale)
    return out


def _prep_plane(img: jnp.ndarray, Hp: int) -> jnp.ndarray:
    """NCHW -> (N, Hp, C*W): channels lane-concatenated, H zero-padded to Hp."""
    N, C, H, W = img.shape
    x = jnp.transpose(img, (0, 2, 1, 3)).reshape(N, H, C * W).astype(jnp.float32)
    if Hp > H:
        x = jnp.pad(x, ((0, 0), (0, Hp - H), (0, 0)))
    return x


def _vmem_budget_bytes(per_step_bytes: int) -> int:
    """Generation-aware scoped-VMEM budget with headroom for compiler scratch."""
    cap = 128 << 20
    try:
        info = pltpu.get_tpu_info()
        cap = int(getattr(info, "vmem_capacity_bytes", cap))
    except Exception:
        cap = 128 << 20
    ceiling = max(int(cap * 0.8), 16 << 20)   # ~20% headroom (matters on v7x: 64 MiB/TC)
    floor = min(32 << 20, ceiling)
    return int(min(max(per_step_bytes, floor), ceiling))


def _ssim_kernel(x_ref, y_ref, ghbd_ref, gwbd_ref, rw_ref, out_ref, *,
                 hop: int, ho: int, c1: float, c2: float):
    # x_ref / y_ref : (Hp, C*W)      one batch element, channels lane-concatenated
    # ghbd_ref      : (5*Hop, 5*Hp)  block-diagonal (over the 5 maps) row-conv matrix
    # gwbd_ref      : (C*W, C*Wo)    block-diagonal (over channels) col-conv matrix
    # rw_ref        : (C*Wo, Cp)     per-channel mean reduction (mask + 1/(Ho*Wo) folded in)
    # out_ref       : (1, Cp)        per-channel mean SSIM, lane-dense (first C lanes valid)
    x = x_ref[...]
    y = y_ref[...]

    # Five SSIM maps, sublane-concatenated. Each piece is Hp rows (multiple of 8),
    # so the concat and the later sublane slices stay (8,128)-tile aligned.
    z = jnp.concatenate([x, y, x * x, y * y, x * y], axis=0)             # (5*Hp, C*W)

    # Stage B: per-channel W contraction, batched over maps x channels (1 MXU call).
    t = jnp.dot(z, gwbd_ref[...], preferred_element_type=jnp.float32)    # (5*Hp, C*Wo)
    # Stage A: per-map H contraction via block-diagonal Gh (1 MXU call).
    s = jnp.dot(ghbd_ref[...], t, preferred_element_type=jnp.float32)    # (5*Hop, C*Wo)

    mu1 = s[0 * hop:1 * hop]
    mu2 = s[1 * hop:2 * hop]
    e_xx = s[2 * hop:3 * hop]
    e_yy = s[3 * hop:4 * hop]
    e_xy = s[4 * hop:5 * hop]

    mu1_sq = mu1 * mu1
    mu2_sq = mu2 * mu2
    mu12 = mu1 * mu2
    sigma1_sq = e_xx - mu1_sq     # keep f32: E[x^2] - mu^2 cancels catastrophically
    sigma2_sq = e_yy - mu2_sq
    sigma12 = e_xy - mu12

    # Fused SSIM map: one EUP reciprocal instead of two VALU divides.
    num = (2.0 * mu12 + c1) * (2.0 * sigma12 + c2)
    den = (mu1_sq + mu2_sq + c1) * (sigma1_sq + sigma2_sq + c2)
    ssim_map = num * pl.reciprocal(den, approx=True)                     # (Hop, C*Wo)

    # Zero the Ho..Hop pad rows (they evaluate to SSIM == 1), then reduce to
    # per-channel means with one small matmul; output row is lane-dense.
    row_valid = lax.broadcasted_iota(jnp.int32, (hop, 1), 0) < ho
    ssim_valid = jnp.where(row_valid, ssim_map, 0.0)
    proj = jnp.dot(ssim_valid, rw_ref[...], preferred_element_type=jnp.float32)  # (Hop, Cp)
    out_ref[...] = jnp.sum(proj, axis=0, keepdims=True)                  # (1, Cp)


def ssim_pallas(img1, img2, *, max_val=1.0, filter_size=11, filter_sigma=1.5,
                k1=0.01, k2=0.03):
    assert img1.shape == img2.shape and img1.ndim == 4
    N, C, H, W = img1.shape
    fs = filter_size
    assert H >= fs and W >= fs, "spatial dims must be >= filter_size for VALID SSIM window"
    Ho, Wo = H - fs + 1, W - fs + 1
    Hp = _round_up(H, 8)          # sublane alignment for the 5-map concat
    Hop = _round_up(Ho, 8)        # sublane alignment for the Stage-A output blocks
    Cp = max(128, _round_up(C, 128))   # lane-dense output row
    CW, CWo = C * W, C * Wo
    c1 = float((k1 * max_val) ** 2)
    c2 = float((k2 * max_val) ** 2)

    g = _gaussian_1d(fs, filter_sigma)
    gh = _toeplitz_band(g, H, fs)                 # (Ho, H)  row conv
    gw = _toeplitz_band(g, W, fs).T               # (W, Wo)  col conv
    ghbd = _block_map_gh(gh, 5, Hp, Hop)          # (5*Hop, 5*Hp)
    gwbd = _block_channel_gw(gw, C, W, Wo)        # (CW, CWo)
    rw = _channel_mean_matrix(C, Wo, Ho, Cp)      # (CWo, Cp)

    # Layout plumbing (not compute hoisting): channels lane-concatenated, H padded.
    x_r = _prep_plane(img1, Hp)                   # (N, Hp, CW)
    y_r = _prep_plane(img2, Hp)

    kernel = functools.partial(_ssim_kernel, hop=Hop, ho=Ho, c1=c1, c2=c2)

    per_step_bytes = 4 * (
        2 * 2 * Hp * CW                                   # img1/img2 blocks, double-buffered
        + 2 * (ghbd.size + gwbd.size + rw.size)           # constants (2 pipeline buffers each)
        + 5 * Hp * CW + 5 * Hp * CWo + 5 * Hop * CWo      # z, t, s
        + 12 * Hop * max(CWo, 128)                        # ssim temporaries (rough)
        + Hop * Cp)
    vmem_limit = _vmem_budget_bytes(per_step_bytes)

    grid_spec = pltpu.PrefetchScalarGridSpec(
        num_scalar_prefetch=0,
        grid=(N,),
        in_specs=[
            pl.BlockSpec((None, Hp, CW), lambda n: (n, 0, 0)),        # img1 plane slab
            pl.BlockSpec((None, Hp, CW), lambda n: (n, 0, 0)),        # img2 plane slab
            pl.BlockSpec((5 * Hop, 5 * Hp), lambda n: (0, 0)),        # Gh block-diag (const idx)
            pl.BlockSpec((CW, CWo), lambda n: (0, 0)),                # Gw block-diag (const idx)
            pl.BlockSpec((CWo, Cp), lambda n: (0, 0)),                # channel-mean matrix
        ],
        out_specs=pl.BlockSpec((None, 1, Cp), lambda n: (n, 0, 0)),   # lane-dense row / step
    )

    per_batch = pl.pallas_call(
        kernel,
        out_shape=jax.ShapeDtypeStruct((N, 1, Cp), jnp.float32),
        grid_spec=grid_spec,
        compiler_params=pltpu.CompilerParams(
            dimension_semantics=("parallel",),     # v7x: both TensorCores split the batch
            vmem_limit_bytes=vmem_limit),
    )(x_r, y_r, ghbd, gwbd, rw)

    ssim_per_channel = per_batch[:, 0, :C]        # == ssim_val from _ssim_per_channel
    return ssim_per_channel.mean(-1).mean()       # matches SSIM.forward


def ssim_reference(img1, img2, *, max_val=1.0, filter_size=11, filter_sigma=1.5,
                   k1=0.01, k2=0.03):
    """Pure-JAX reference (depthwise VALID conv) for validation."""
    N, C, H, W = img1.shape
    filt = make_ssim_filter(filter_size, filter_sigma)
    kernel = jnp.tile(filt[None, None], (C, 1, 1, 1))   # (C, 1, fs, fs)

    def conv(z):
        return lax.conv_general_dilated(
            z, kernel, window_strides=(1, 1), padding="VALID",
            dimension_numbers=("NCHW", "OIHW", "NCHW"), feature_group_count=C)

    c1 = (k1 * max_val) ** 2
    c2 = (k2 * max_val) ** 2
    mu1, mu2 = conv(img1), conv(img2)
    sigma1_sq = conv(img1 * img1) - mu1 * mu1
    sigma2_sq = conv(img2 * img2) - mu2 * mu2
    sigma12 = conv(img1 * img2) - mu1 * mu2
    luminance = (2 * mu1 * mu2 + c1) / (mu1 * mu1 + mu2 * mu2 + c1)
    cs = (2 * sigma12 + c2) / (sigma1_sq + sigma2_sq + c2)
    ssim_val = (luminance * cs).mean(axis=(2, 3))       # (N, C)
    return ssim_val.mean(-1).mean()


if __name__ == "__main__":
    key = jax.random.PRNGKey(0)
    ka, kb = jax.random.split(key)
    shape = (2, 4, 16, 16)                              # N, C, H, W
    img1 = jax.random.uniform(ka, shape, dtype=jnp.float32)
    img2 = jnp.clip(img1 + 0.1 * jax.random.normal(kb, shape, dtype=jnp.float32),
                    0.0, 1.0)

    out = jax.jit(ssim_pallas)(img1, img2)
    out = jax.block_until_ready(out)

    ref = ssim_reference(img1, img2)
    assert jnp.abs(out - ref) < 1e-3, (float(out), float(ref))
    print("KERNEL_OK")
</pallas_src>

<mosaic_0001>
module attributes {stable_mosaic.version = 11 : i64} {
  func.func @_ssim_kernel(%arg0: i32, %arg1: memref<1x16x64xf32, #tpu.memory_space<vmem>>, %arg2: memref<1x16x64xf32, #tpu.memory_space<vmem>>, %arg3: memref<40x80xf32, #tpu.memory_space<vmem>>, %arg4: memref<64x24xf32, #tpu.memory_space<vmem>>, %arg5: memref<24x128xf32, #tpu.memory_space<vmem>>, %arg6: memref<1x1x128xf32, #tpu.memory_space<vmem>>) attributes {dimension_semantics = [#tpu.dimension_semantics<parallel>], iteration_bounds = array<i64: 2>, scalar_prefetch = 0 : i64, scratch_operands = 0 : i64, tpu.core_type = #tpu.core_type<tc>, window_params = [{transform_indices = @transform_0, window_bounds = array<i64: 1, 16, 64>}, {transform_indices = @transform_1, window_bounds = array<i64: 1, 16, 64>}, {pipeline_mode = #tpu.pipeline_mode<synchronous>, transform_indices = @transform_2, window_bounds = array<i64: 40, 80>}, {pipeline_mode = #tpu.pipeline_mode<synchronous>, transform_indices = @transform_3, window_bounds = array<i64: 64, 24>}, {pipeline_mode = #tpu.pipeline_mode<synchronous>, transform_indices = @transform_4, window_bounds = array<i64: 24, 128>}, {transform_indices = @transform_5, window_bounds = array<i64: 1, 1, 128>}]} {
    %c0 = arith.constant 0 : index
    %c0_0 = arith.constant 0 : index
    %c0_1 = arith.constant 0 : index
    %0 = vector.load %arg1[%c0, %c0_0, %c0_1] : memref<1x16x64xf32, #tpu.memory_space<vmem>>, vector<1x16x64xf32>
    %1 = vector.shape_cast %0 : vector<1x16x64xf32> to vector<16x64xf32>
    %c0_2 = arith.constant 0 : index
    %c0_3 = arith.constant 0 : index
    %c0_4 = arith.constant 0 : index
    %2 = vector.load %arg2[%c0_2, %c0_3, %c0_4] : memref<1x16x64xf32, #tpu.memory_space<vmem>>, vector<1x16x64xf32>
    %3 = vector.shape_cast %2 : vector<1x16x64xf32> to vector<16x64xf32>
    %4 = arith.mulf %1, %1 : vector<16x64xf32>
    %5 = arith.mulf %3, %3 : vector<16x64xf32>
    %6 = arith.mulf %1, %3 : vector<16x64xf32>
    %7 = tpu.concatenate %1, %3, %4, %5, %6 in 0 : vector<16x64xf32>, vector<16x64xf32>, vector<16x64xf32>, vector<16x64xf32>, vector<16x64xf32> -> vector<80x64xf32>
    %c0_5 = arith.constant 0 : index
    %c0_6 = arith.constant 0 : index
    %8 = vector.load %arg4[%c0_5, %c0_6] : memref<64x24xf32, #tpu.memory_space<vmem>>, vector<64x24xf32>
    %cst = arith.constant dense<0.000000e+00> : vector<80x24xf32>
    %9 = tpu.matmul %7, %8, %cst {dimension_numbers = #tpu.dot_dimension_numbers<[1], [0], [0], [1], [0, 0, 1, 1], [], []>} : vector<80x64xf32>, vector<64x24xf32>, vector<80x24xf32> -> vector<80x24xf32>
    %c0_7 = arith.constant 0 : index
    %c0_8 = arith.constant 0 : index
    %10 = vector.load %arg3[%c0_7, %c0_8] : memref<40x80xf32, #tpu.memory_space<vmem>>, vector<40x80xf32>
    %cst_9 = arith.constant dense<0.000000e+00> : vector<40x24xf32>
    %11 = tpu.matmul %10, %9, %cst_9 {dimension_numbers = #tpu.dot_dimension_numbers<[1], [0], [0], [1], [0, 0, 1, 1], [], []>} : vector<40x80xf32>, vector<80x24xf32>, vector<40x24xf32> -> vector<40x24xf32>
    %12 = vector.extract_strided_slice %11 {offsets = [0, 0], sizes = [8, 24], strides = [1, 1]} : vector<40x24xf32> to vector<8x24xf32>
    %13 = vector.extract_strided_slice %11 {offsets = [8, 0], sizes = [8, 24], strides = [1, 1]} : vector<40x24xf32> to vector<8x24xf32>
    %14 = vector.extract_strided_slice %11 {offsets = [16, 0], sizes = [8, 24], strides = [1, 1]} : vector<40x24xf32> to vector<8x24xf32>
    %15 = vector.extract_strided_slice %11 {offsets = [24, 0], sizes = [8, 24], strides = [1, 1]} : vector<40x24xf32> to vector<8x24xf32>
    %16 = vector.extract_strided_slice %11 {offsets = [32, 0], sizes = [8, 24], strides = [1, 1]} : vector<40x24xf32> to vector<8x24xf32>
    %17 = arith.mulf %12, %12 : vector<8x24xf32>
    %18 = arith.mulf %13, %13 : vector<8x24xf32>
    %19 = arith.mulf %12, %13 : vector<8x24xf32>
    %20 = arith.subf %14, %17 : vector<8x24xf32>
    %21 = arith.subf %15, %18 : vector<8x24xf32>
    %22 = arith.subf %16, %19 : vector<8x24xf32>
    %cst_10 = arith.constant 2.000000e+00 : f32
    %23 = vector.broadcast %cst_10 : f32 to vector<8x24xf32>
    %24 = arith.mulf %23, %19 : vector<8x24xf32>
    %cst_11 = arith.constant 9.99999974E-5 : f32
    %25 = vector.broadcast %cst_11 : f32 to vector<8x24xf32>
    %26 = arith.addf %24, %25 : vector<8x24xf32>
    %cst_12 = arith.constant 2.000000e+00 : f32
    %27 = vector.broadcast %cst_12 : f32 to vector<8x24xf32>
    %28 = arith.mulf %27, %22 : vector<8x24xf32>
    %cst_13 = arith.constant 8.99999984E-4 : f32
    %29 = vector.broadcast %cst_13 : f32 to vector<8x24xf32>
    %30 = arith.addf %28, %29 : vector<8x24xf32>
    %31 = arith.mulf %26, %30 : vector<8x24xf32>
    %32 = arith.addf %17, %18 : vector<8x24xf32>
    %cst_14 = arith.constant 9.99999974E-5 : f32
    %33 = vector.broadcast %cst_14 : f32 to vector<8x24xf32>
    %34 = arith.addf %32, %33 : vector<8x24xf32>
    %35 = arith.addf %20, %21 : vector<8x24xf32>
    %cst_15 = arith.constant 8.99999984E-4 : f32
    %36 = vector.broadcast %cst_15 : f32 to vector<8x24xf32>
    %37 = arith.addf %35, %36 : vector<8x24xf32>
    %38 = arith.mulf %34, %37 : vector<8x24xf32>
    %39 = tpu.reciprocal %38 {approx = true} : vector<8x24xf32> -> vector<8x24xf32>
    %40 = arith.mulf %31, %39 : vector<8x24xf32>
    %41 = tpu.iota {dimensions = array<i32: 0>} : vector<8x1xi32>
    %c6_i32 = arith.constant 6 : i32
    %42 = vector.broadcast %c6_i32 : i32 to vector<8x1xi32>
    %43 = arith.cmpi slt, %41, %42 : vector<8x1xi32>
    %cst_16 = arith.constant 0.000000e+00 : f32
    %44 = vector.shape_cast %43 : vector<8x1xi1> to vector<8x1xi1>
    %45 = vector.broadcast %44 : vector<8x1xi1> to vector<8x24xi1>
    %46 = vector.broadcast %cst_16 : f32 to vector<8x24xf32>
    %47 = arith.select %45, %40, %46 : vector<8x24xi1>, vector<8x24xf32>
    %c0_17 = arith.constant 0 : index
    %c0_18 = arith.constant 0 : index
    %48 = vector.load %arg5[%c0_17, %c0_18] : memref<24x128xf32, #tpu.memory_space<vmem>>, vector<24x128xf32>
    %cst_19 = arith.constant dense<0.000000e+00> : vector<8x128xf32>
    %49 = tpu.matmul %47, %48, %cst_19 {dimension_numbers = #tpu.dot_dimension_numbers<[1], [0], [0], [1], [0, 0, 1, 1], [], []>} : vector<8x24xf32>, vector<24x128xf32>, vector<8x128xf32> -> vector<8x128xf32>
    %cst_20 = arith.constant dense<0.000000e+00> : vector<128xf32>
    %50 = vector.multi_reduction <add>, %49, %cst_20 [0] : vector<8x128xf32> to vector<128xf32>
    %51 = vector.shape_cast %50 : vector<128xf32> to vector<1x128xf32>
    %c0_21 = arith.constant 0 : index
    %c0_22 = arith.constant 0 : index
    %c0_23 = arith.constant 0 : index
    %52 = vector.load %arg6[%c0_21, %c0_22, %c0_23] : memref<1x1x128xf32, #tpu.memory_space<vmem>>, vector<1x1x128xf32>
    %53 = vector.shape_cast %52 : vector<1x1x128xf32> to vector<1x128xf32>
    %54 = vector.shape_cast %51 : vector<1x128xf32> to vector<1x1x128xf32>
    tpu.vector_store %arg6[%c0_21, %c0_22, %c0_23], %54 {strides = array<i32>} : memref<1x1x128xf32, #tpu.memory_space<vmem>>, vector<1x1x128xf32>,
    return
  }
  func.func @transform_0(%arg0: i32) -> (i32, i32, i32) {
    %c0_i32 = arith.constant 0 : i32
    %c0_i32_0 = arith.constant 0 : i32
    %c0_i32_1 = arith.constant 0 : i32
    return %arg0, %c0_i32, %c0_i32_0 : i32, i32, i32
  }
  func.func @transform_1(%arg0: i32) -> (i32, i32, i32) {
    %c0_i32 = arith.constant 0 : i32
    %c0_i32_0 = arith.constant 0 : i32
    %c0_i32_1 = arith.constant 0 : i32
    return %arg0, %c0_i32, %c0_i32_0 : i32, i32, i32
  }
  func.func @transform_2(%arg0: i32) -> (i32, i32) {
    %c0_i32 = arith.constant 0 : i32
    %c0_i32_0 = arith.constant 0 : i32
    %c0_i32_1 = arith.constant 0 : i32
    return %c0_i32, %c0_i32_0 : i32, i32
  }
  func.func @transform_3(%arg0: i32) -> (i32, i32) {
    %c0_i32 = arith.constant 0 : i32
    %c0_i32_0 = arith.constant 0 : i32
    %c0_i32_1 = arith.constant 0 : i32
    return %c0_i32, %c0_i32_0 : i32, i32
  }
  func.func @transform_4(%arg0: i32) -> (i32, i32) {
    %c0_i32 = arith.constant 0 : i32
    %c0_i32_0 = arith.constant 0 : i32
    %c0_i32_1 = arith.constant 0 : i32
    return %c0_i32, %c0_i32_0 : i32, i32
  }
  func.func @transform_5(%arg0: i32) -> (i32, i32, i32) {
    %c0_i32 = arith.constant 0 : i32
    %c0_i32_0 = arith.constant 0 : i32
    %c0_i32_1 = arith.constant 0 : i32
    return %arg0, %c0_i32, %c0_i32_0 : i32, i32, i32
  }
}

</mosaic_0001>

<llo_original>
// kernel: ssim_pallas.1
$region0: #{ssim_pallas.1}
  #allocation0 [shape = 'u32[]', space=smem, size = 0x4, offset = 0x4, fixed_abs, tag = 'smem constant byte address 0x4 - core index']
  #allocation1 [shape = 'u32[144,128]{1,0:T(1,128)}', space=vmem, size = 0x12000, scoped, tag = 'internal scratch']
  %s0 = inlined_call_operand.vmem [shape: f32[2,16,64], index: 0, kind: input, shape index: {}]
  %s1 = inlined_call_operand.vmem [shape: f32[2,16,64], index: 1, kind: input, shape index: {}]
  %s2 = inlined_call_operand.vmem [shape: f32[40,80], index: 2, kind: input, shape index: {}]
  %s3 = inlined_call_operand.vmem [shape: f32[64,24], index: 3, kind: input, shape index: {}]
  %s4 = inlined_call_operand.vmem [shape: f32[24,128], index: 4, kind: input, shape index: {}]
  %s5 = inlined_call_operand.vmem [shape: f32[2,1,128], index: 5, kind: output, shape index: {}]
  %s6 = sld [smem:[#allocation0]]
  $region53: #{ssim_pallas.1} parent=0
    _
  %s8 = ssub.s32 1, %s6
  %s9 = scalar_select 0, %s8, %s6
  loop: start=0, step=1, limit=4
  $region2: #{ssim_pallas.1} parent=0 // loop_pre_header
    _
  $region3: #{ssim_pallas.1} parent=0 // loop_header
    %s11 = sphi 0, %s15
    %p12 = scmp.ge.s32.totalorder %s11, 4
    %s21 = sphi 0, %s23
    %s24 = sphi 0, %s21
    %s25 = sphi 0, %s24
    %s41 = sphi 0, %s25
    %s47 = sphi 0, %s49
    %s50 = sphi 0, %s47
    %s51 = sphi 0, %s50
    %s67 = sphi 0, %s51
    %s71 = sphi 0, %s71
    %s73 = sphi 0, %s71
    %s74 = sphi 0, %s73
    %s88 = sphi 0, %s74
    %s92 = sphi 0, %s92
    %s94 = sphi 0, %s92
    %s95 = sphi 0, %s94
    %s109 = sphi 0, %s95
    %s113 = sphi 0, %s113
    %s115 = sphi 0, %s113
    %s116 = sphi 0, %s115
    %s130 = sphi 0, %s116
    %s136 = sphi 0, %s138
    %s139 = sphi 0, %s136
    %s140 = sphi 0, %s139
    %s156 = sphi 0, %s140
  $region4: #{ssim_pallas.1} parent=0 // loop_header_branch
    %14 = sbr.rel (%p12) target = $region8
  $region5: #{ssim_pallas.1} parent=0 // loop_body
    %s16 = ssub.s32 %s11, 1
    %s17 = ssub.s32 %s11, 2
    %s18 = sadd.s32 %s11, 1
    %s19 = ssub.s32 %s11, %s18
    %p20 = scmp.eq.s32.totalorder %s19, 0
    %s22 = sadd.s32 %s21, 1
    %s23 = scalar_select %p20, %s21, %s22
    %p26 = pneg %p20
    %p27 = scmp.eq.s32.totalorder %s11, 1
    %p28 = por %p26, %p27
    %p29 = scmp.ne.s32.totalorder %s21, %s24
    %p30 = scmp.eq.s32.totalorder %s11, 0
    %p31 = por %p29, %p30
    %p32 = scmp.ne.s32.totalorder %s21, %s24
    %p33 = scmp.eq.s32.totalorder %s16, 1
    %p34 = por %p32, %p33
    %p35 = scmp.ne.s32.totalorder %s24, %s25
    %p36 = scmp.eq.s32.totalorder %s16, 0
    %p37 = por %p35, %p36
    %p38 = scmp.ne.s32.totalorder %s24, %s25
    %p39 = scmp.eq.s32.totalorder %s17, 1
    %p40 = por %p38, %p39
    %p42 = scmp.ne.s32.totalorder %s25, %s41
    %p43 = scmp.eq.s32.totalorder %s17, 0
    %p44 = por %p42, %p43
    %s45 = ssub.s32 %s11, %s18
    %p46 = scmp.eq.s32.totalorder %s45, 0
    %s48 = sadd.s32 %s47, 1
    %s49 = scalar_select %p46, %s47, %s48
    %p52 = pneg %p46
    %p53 = scmp.eq.s32.totalorder %s11, 1
    %p54 = por %p52, %p53
    %p55 = scmp.ne.s32.totalorder %s47, %s50
    %p56 = scmp.eq.s32.totalorder %s11, 0
    %p57 = por %p55, %p56
    %p58 = scmp.ne.s32.totalorder %s47, %s50
    %p59 = scmp.eq.s32.totalorder %s16, 1
    %p60 = por %p58, %p59
    %p61 = scmp.ne.s32.totalorder %s50, %s51
    %p62 = scmp.eq.s32.totalorder %s16, 0
    %p63 = por %p61, %p62
    %p64 = scmp.ne.s32.totalorder %s50, %s51
    %p65 = scmp.eq.s32.totalorder %s17, 1
    %p66 = por %p64, %p65
    %p68 = scmp.ne.s32.totalorder %s51, %s67
    %p69 = scmp.eq.s32.totalorder %s17, 0
    %p70 = por %p68, %p69
    %s72 = sadd.s32 %s71, 1
    %p75 = scmp.eq.s32.totalorder %s11, 1
    %p76 = scmp.ne.s32.totalorder %s71, %s73
    %p77 = scmp.eq.s32.totalorder %s11, 0
    %p78 = por %p76, %p77
    %p79 = scmp.ne.s32.totalorder %s71, %s73
    %p80 = scmp.eq.s32.totalorder %s16, 1
    %p81 = por %p79, %p80
    %p82 = scmp.ne.s32.totalorder %s73, %s74
    %p83 = scmp.eq.s32.totalorder %s16, 0
    %p84 = por %p82, %p83
    %p85 = scmp.ne.s32.totalorder %s73, %s74
    %p86 = scmp.eq.s32.totalorder %s17, 1
    %p87 = por %p85, %p86
    %p89 = scmp.ne.s32.totalorder %s74, %s88
    %p90 = scmp.eq.s32.totalorder %s17, 0
    %p91 = por %p89, %p90
    %s93 = sadd.s32 %s92, 1
    %p96 = scmp.eq.s32.totalorder %s11, 1
    %p97 = scmp.ne.s32.totalorder %s92, %s94
    %p98 = scmp.eq.s32.totalorder %s11, 0
    %p99 = por %p97, %p98
    %p100 = scmp.ne.s32.totalorder %s92, %s94
    %p101 = scmp.eq.s32.totalorder %s16, 1
    %p102 = por %p100, %p101
    %p103 = scmp.ne.s32.totalorder %s94, %s95
    %p104 = scmp.eq.s32.totalorder %s16, 0
    %p105 = por %p103, %p104
    %p106 = scmp.ne.s32.totalorder %s94, %s95
    %p107 = scmp.eq.s32.totalorder %s17, 1
    %p108 = por %p106, %p107
    %p110 = scmp.ne.s32.totalorder %s95, %s109
    %p111 = scmp.eq.s32.totalorder %s17, 0
    %p112 = por %p110, %p111
    %s114 = sadd.s32 %s113, 1
    %p117 = scmp.eq.s32.totalorder %s11, 1
    %p118 = scmp.ne.s32.totalorder %s113, %s115
    %p119 = scmp.eq.s32.totalorder %s11, 0
    %p120 = por %p118, %p119
    %p121 = scmp.ne.s32.totalorder %s113, %s115
    %p122 = scmp.eq.s32.totalorder %s16, 1
    %p123 = por %p121, %p122
    %p124 = scmp.ne.s32.totalorder %s115, %s116
    %p125 = scmp.eq.s32.totalorder %s16, 0
    %p126 = por %p124, %p125
    %p127 = scmp.ne.s32.totalorder %s115, %s116
    %p128 = scmp.eq.s32.totalorder %s17, 1
    %p129 = por %p127, %p128
    %p131 = scmp.ne.s32.totalorder %s116, %s130
    %p132 = scmp.eq.s32.totalorder %s17, 0
    %p133 = por %p131, %p132
    %s134 = ssub.s32 %s11, %s18
    %p135 = scmp.eq.s32.totalorder %s134, 0
    %s137 = sadd.s32 %s136, 1
    %s138 = scalar_select %p135, %s136, %s137
    %p141 = pneg %p135
    %p142 = scmp.eq.s32.totalorder %s11, 1
    %p143 = por %p141, %p142
    %p144 = scmp.ne.s32.totalorder %s136, %s139
    %p145 = scmp.eq.s32.totalorder %s11, 0
    %p146 = por %p144, %p145
    %p147 = scmp.ne.s32.totalorder %s136, %s139
    %p148 = scmp.eq.s32.totalorder %s16, 1
    %p149 = por %p147, %p148
    %p150 = scmp.ne.s32.totalorder %s139, %s140
    %p151 = scmp.eq.s32.totalorder %s16, 0
    %p152 = por %p150, %p151
    %p153 = scmp.ne.s32.totalorder %s139, %s140
    %p154 = scmp.eq.s32.totalorder %s17, 1
    %p155 = por %p153, %p154
    %p157 = scmp.ne.s32.totalorder %s140, %s156
    %p158 = scmp.eq.s32.totalorder %s17, 0
    %p159 = por %p157, %p158
    %p160 = scmp.le.s32.totalorder 1, %s11
    %p161 = scmp.lt.s32.totalorder %s11, 3
    %p162 = pnand %p160, %p161
    %p163 = pneg %p162
    // Predicated region
    $region9: #{ssim_pallas.1} parent=5 // pred_check
      _
    $region10: #{ssim_pallas.1} parent=5 // pred_check_branch
      %165 = sbr.rel (%p162) target = $region12
    $region11: #{ssim_pallas.1} parent=5 // pred_region
      %s166 = ssub.s32 %s11, 1
      // Predicated region
      $region13: #{ssim_pallas.1} parent=11 // pred_check
        %p167 = pneg %p84
      $region14: #{ssim_pallas.1} parent=11 // pred_check_branch
        %169 = sbr.rel (%p167) target = $region16
      $region15: #{ssim_pallas.1} parent=11 // pred_region
        _
      $region16: #{ssim_pallas.1} parent=11 // pred_fallthru
        _
      // Predicated region
      $region17: #{ssim_pallas.1} parent=11 // pred_check
        %p170 = pneg %p105
      $region18: #{ssim_pallas.1} parent=11 // pred_check_branch
        %172 = sbr.rel (%p170) target = $region20
      $region19: #{ssim_pallas.1} parent=11 // pred_region
        _
      $region20: #{ssim_pallas.1} parent=11 // pred_fallthru
        _
      // Predicated region
      $region21: #{ssim_pallas.1} parent=11 // pred_check
        %p173 = pneg %p126
      $region22: #{ssim_pallas.1} parent=11 // pred_check_branch
        %175 = sbr.rel (%p173) target = $region24
      $region23: #{ssim_pallas.1} parent=11 // pred_region
        _
      $region24: #{ssim_pallas.1} parent=11 // pred_fallthru
        _
    $region12: #{ssim_pallas.1} parent=5 // pred_fallthru
      _
    %p176 = scmp.lt.s32.totalorder %s11, 2
    // Predicated region
    $region25: #{ssim_pallas.1} parent=5 // pred_check
      %p177 = pneg %p176
    $region26: #{ssim_pallas.1} parent=5 // pred_check_branch
      %179 = sbr.rel (%p177) target = $region28
    $region27: #{ssim_pallas.1} parent=5 // pred_region
      // Predicated region
      $region29: #{ssim_pallas.1} parent=27 // pred_check
        %p180 = pneg %p31
      $region30: #{ssim_pallas.1} parent=27 // pred_check_branch
        %182 = sbr.rel (%p180) target = $region32
      $region31: #{ssim_pallas.1} parent=27 // pred_region
        %p183 = scmp.lt.s32.totalorder %s11, 1
        %s184 = scalar_select %p183, %s11, 1
        %s185 = smul.addr %s184, 2
        %s186 = smul.addr %s185, 8
        %s187 = scalar_lea.vmem %s0, %s186
      $region32: #{ssim_pallas.1} parent=27 // pred_fallthru
        _
      // Predicated region
      $region33: #{ssim_pallas.1} parent=27 // pred_check
        %p188 = pneg %p57
      $region34: #{ssim_pallas.1} parent=27 // pred_check_branch
        %190 = sbr.rel (%p188) target = $region36
      $region35: #{ssim_pallas.1} parent=27 // pred_region
        %p191 = scmp.lt.s32.totalorder %s11, 1
        %s192 = scalar_select %p191, %s11, 1
        %s193 = smul.addr %s192, 2
        %s194 = smul.addr %s193, 8
        %s195 = scalar_lea.vmem %s1, %s194
      $region36: #{ssim_pallas.1} parent=27 // pred_fallthru
        _
    $region28: #{ssim_pallas.1} parent=5 // pred_fallthru
      _
    %p196 = scmp.le.s32.totalorder 1, %s11
    %p197 = scmp.lt.s32.totalorder %s11, 3
    %p198 = pnand %p196, %p197
    %p199 = pneg %p198
    // Predicated region
    $region37: #{ssim_pallas.1} parent=5 // pred_check
      _
    $region38: #{ssim_pallas.1} parent=5 // pred_check_branch
      %201 = sbr.rel (%p198) target = $region40
    $region39: #{ssim_pallas.1} parent=5 // pred_region
      %s202 = ssub.s32 %s11, 1
      %p203 = scmp.lt.s32.totalorder %s16, 1
      %s204 = scalar_select %p203, %s16, 1
      %s205 = smul.addr %s204, 2
      %s206 = smul.addr %s205, 8
      %s207 = scalar_lea.vmem %s0, %s206
      %p208 = pneg %p37
      %p209 = pneg %p34
      %p210 = scmp.lt.s32.totalorder %s16, 1
      %s211 = scalar_select %p210, %s16, 1
      %s212 = smul.addr %s211, 2
      %s213 = smul.addr %s212, 8
      %s214 = scalar_lea.vmem %s1, %s213
      %p215 = pneg %p63
      %p216 = pneg %p60
      %p217 = pneg %p84
      %p218 = pneg %p81
      %p219 = pneg %p105
      %p220 = pneg %p102
      %p221 = pneg %p126
      %p222 = pneg %p123
      %p223 = pneg %p152
      %p224 = pneg %p149
      %p225 = scmp.lt.s32.totalorder %s16, 1
      %s226 = scalar_select %p225, %s16, 1
      %s227 = scalar_lea.vmem %s5, %s226
      %p228 = scmp.lt.s32.totalorder %s16, 1
      %s229 = scalar_select %p228, %s16, 1
      %s230 = smul.addr %s229, 2
      %s231 = smul.addr %s230, 8
      %s232 = scalar_lea.vmem %s0, %s231
      %p233 = scmp.lt.s32.totalorder %s16, 1
      %s234 = scalar_select %p233, %s16, 1
      %s235 = smul.addr %s234, 2
      %s236 = smul.addr %s235, 8
      %s237 = scalar_lea.vmem %s1, %s236
      %p238 = scmp.lt.s32.totalorder %s16, 1
      %s239 = scalar_select %p238, %s16, 1
      %s240 = scalar_lea.vmem %s5, %s239
      %v241 = vld [vmem:[%s232] sm:$0xff]
      %v242 = vld [vmem:[%s232 + $0x8] sm:$0xff]
      %v243 = vld [vmem:[%s237] sm:$0xff]
      %v244 = vld [vmem:[%s237 + $0x8] sm:$0xff]
      %v245 = vmul.f32 %v241, %v241
      %v246 = vmul.f32 %v242, %v242
      %v247 = vmul.f32 %v243, %v243
      %v248 = vmul.f32 %v244, %v244
      %v249 = vmul.f32 %v241, %v243
      %v250 = vmul.f32 %v242, %v244
      %v251 = vld [vmem:[%s3] sm:$0xff]
      %v252 = vld [vmem:[%s3 + $0x8] sm:$0xff]
      %v253 = vld [vmem:[%s3 + $0x10] sm:$0xff]
      %v254 = vld [vmem:[%s3 + $0x18] sm:$0xff]
      %v255 = vld [vmem:[%s3 + $0x20] sm:$0xff]
      %v256 = vld [vmem:[%s3 + $0x28] sm:$0xff]
      %v257 = vld [vmem:[%s3 + $0x30] sm:$0xff]
      %v258 = vld [vmem:[%s3 + $0x38] sm:$0xff]
      %vm259 = vcmask 523264
      %v261 = vsel %vm259, %v241, 0
      %v264 = vsel %vm259, %v242, 0
      %v267 = vsel %vm259, %v243, 0
      %v270 = vsel %vm259, %v244, 0
      %v273 = vsel %vm259, %v245, 0
      %v276 = vsel %vm259, %v246, 0
      %v279 = vsel %vm259, %v247, 0
      %v282 = vsel %vm259, %v248, 0
      %v285 = vsel %vm259, %v249, 0
      %v288 = vsel %vm259, %v250, 0
      %290 = vmatprep.subr.mxu0 0.0
      %291 = vmatpush1.msra.mxu0 0.0
      %292 = vmatprep.subr.mxu0 0.0
      %293 = vmatpush1.msra.mxu0 0.0
      %294 = vmatprep.subr.mxu0 0.0
      %295 = vmatpush1.msra.mxu0 0.0
      %296 = vmatprep.subr.mxu0 0.0
      %297 = vmatpush1.msra.mxu0 0.0
      %298 = vmatprep.subr.mxu0 0.0
      %299 = vmatpush1.msra.mxu0 0.0
      %300 = vmatprep.subr.mxu0 0.0
      %301 = vmatpush1.msra.mxu0 0.0
      %302 = vmatprep.subr.mxu0 0.0
      %303 = vmatpush1.msra.mxu0 0.0
      %304 = vmatprep.subr.mxu0 0.0
      %305 = vmatpush1.msra.mxu0 0.0
      %306 = vmatprep.subr.mxu0 0.0
      %307 = vmatpush1.msra.mxu0 %v258
      %308 = vmatprep.subr.mxu0 0.0
      %309 = vmatpush1.msra.mxu0 %v257
      %310 = vmatprep.subr.mxu0 0.0
      %311 = vmatpush1.msra.mxu0 %v256
      %312 = vmatprep.subr.mxu0 0.0
      %313 = vmatpush1.msra.mxu0 %v255
      %314 = vmatprep.subr.mxu0 0.0
      %315 = vmatpush1.msra.mxu0 %v254
      %316 = vmatprep.subr.mxu0 0.0
      %317 = vmatpush1.msra.mxu0 %v253
      %318 = vmatprep.subr.mxu0 0.0
      %319 = vmatpush1.msra.mxu0 %v252
      %320 = vmatprep.subr.mxu0 0.0
      %321 = vmatpush1.msra.mxu0 %v251
      %322 = vmatprep.subr.mxu0 0.0
      %323 = vmatpush2.msra.mxu0 0.0
      %324 = vmatprep.subr.mxu0 0.0
      %325 = vmatpush2.msra.mxu0 0.0
      %326 = vmatprep.subr.mxu0 0.0
      %327 = vmatpush2.msra.mxu0 0.0
      %328 = vmatprep.subr.mxu0 0.0
      %329 = vmatpush2.msra.mxu0 0.0
      %330 = vmatprep.subr.mxu0 0.0
      %331 = vmatpush2.msra.mxu0 0.0
      %332 = vmatprep.subr.mxu0 0.0
      %333 = vmatpush2.msra.mxu0 0.0
      %334 = vmatprep.subr.mxu0 0.0
      %335 = vmatpush2.msra.mxu0 0.0
      %336 = vmatprep.subr.mxu0 0.0
      %337 = vmatpush2.msra.mxu0 0.0
      %338 = vmatprep.subr.mxu0 0.0
      %339 = vmatpush2.msra.mxu0 0.0
      %340 = vmatprep.subr.mxu0 0.0
      %341 = vmatpush2.msra.mxu0 0.0
      %342 = vmatprep.subr.mxu0 0.0
      %343 = vmatpush2.msra.mxu0 0.0
      %344 = vmatprep.subr.mxu0 0.0
      %345 = vmatpush2.msra.mxu0 0.0
      %346 = vmatprep.subr.mxu0 0.0
      %347 = vmatpush2.msra.mxu0 0.0
      %348 = vmatprep.subr.mxu0 0.0
      %349 = vmatpush2.msra.mxu0 0.0
      %350 = vmatprep.subr.mxu0 0.0
      %351 = vmatpush2.msra.mxu0 0.0
      %352 = vmatprep.subr.mxu0 0.0
      %353 = vmatpush2.msra.mxu0 0.0
      %354 = vmatprep.mubr.f32.mxu0 0.0
      %355 = vmatmul.mubr.f32.gmra.mxu0 %v261
      %v356 = vpop.f32.mrf.mxu0
      %v357 = vadd.f32 0.0, %v356
      %v358 = vpop.f32.mrf.mxu0
      %359 = vmatprep.mubr.f32.mxu0 0.0
      %360 = vmatmul.mubr.f32.gmra.mxu0 %v264
      %v361 = vpop.f32.mrf.mxu0
      %v362 = vadd.f32 0.0, %v361
      %v363 = vpop.f32.mrf.mxu0
      %364 = vmatprep.mubr.f32.mxu0 0.0
      %365 = vmatmul.mubr.f32.gmra.mxu0 %v267
      %v366 = vpop.f32.mrf.mxu0
      %v367 = vadd.f32 0.0, %v366
      %v368 = vpop.f32.mrf.mxu0
      %369 = vmatprep.mubr.f32.mxu0 0.0
      %370 = vmatmul.mubr.f32.gmra.mxu0 %v270
      %v371 = vpop.f32.mrf.mxu0
      %v372 = vadd.f32 0.0, %v371
      %v373 = vpop.f32.mrf.mxu0
      %374 = vmatprep.mubr.f32.mxu0 0.0
      %375 = vmatmul.mubr.f32.gmra.mxu0 %v273
      %v376 = vpop.f32.mrf.mxu0
      %v377 = vadd.f32 0.0, %v376
      %v378 = vpop.f32.mrf.mxu0
      %379 = vmatprep.mubr.f32.mxu0 0.0
      %380 = vmatmul.mubr.f32.gmra.mxu0 %v276
      %v381 = vpop.f32.mrf.mxu0
      %v382 = vadd.f32 0.0, %v381
      %v383 = vpop.f32.mrf.mxu0
      %384 = vmatprep.mubr.f32.mxu0 0.0
      %385 = vmatmul.mubr.f32.gmra.mxu0 %v279
      %v386 = vpop.f32.mrf.mxu0
      %v387 = vadd.f32 0.0, %v386
      %v388 = vpop.f32.mrf.mxu0
      %389 = vmatprep.mubr.f32.mxu0 0.0
      %390 = vmatmul.mubr.f32.gmra.mxu0 %v282
      %v391 = vpop.f32.mrf.mxu0
      %v392 = vadd.f32 0.0, %v391
      %v393 = vpop.f32.mrf.mxu0
      %394 = vmatprep.mubr.f32.mxu0 0.0
      %395 = vmatmul.mubr.f32.gmra.mxu0 %v285
      %v396 = vpop.f32.mrf.mxu0
      %v397 = vadd.f32 0.0, %v396
      %v398 = vpop.f32.mrf.mxu0
      %399 = vmatprep.mubr.f32.mxu0 0.0
      %400 = vmatmul.mubr.f32.gmra.mxu0 %v288
      %v401 = vpop.f32.mrf.mxu0
      %v402 = vadd.f32 0.0, %v401
      %v403 = vpop.f32.mrf.mxu0
      %404 = vdwg.mxu0
      %v405 = vld [vmem:[%s2] sm:$0xff]
      %v406 = vld [vmem:[%s2 + $0x8] sm:$0xff]
      %v407 = vld [vmem:[%s2 + $0x10] sm:$0xff]
      %v408 = vld [vmem:[%s2 + $0x18] sm:$0xff]
      %v409 = vld [vmem:[%s2 + $0x20] sm:$0xff]
      %vm410 = vcmask 654336
      %v412 = vsel %vm410, %v405, 0
      %v415 = vsel %vm410, %v406, 0
      %v418 = vsel %vm410, %v407, 0
      %v421 = vsel %vm410, %v408, 0
      %v424 = vsel %vm410, %v409, 0
      %426 = vmatprep.subr.mxu0 0.0
      %427 = vmatpush1.msra.mxu0 0.0
      %428 = vmatprep.subr.mxu0 0.0
      %429 = vmatpush1.msra.mxu0 0.0
      %430 = vmatprep.subr.mxu0 0.0
      %431 = vmatpush1.msra.mxu0 0.0
      %432 = vmatprep.subr.mxu0 0.0
      %433 = vmatpush1.msra.mxu0 0.0
      %434 = vmatprep.subr.mxu0 0.0
      %435 = vmatpush1.msra.mxu0 0.0
      %436 = vmatprep.subr.mxu0 0.0
      %437 = vmatpush1.msra.mxu0 0.0
      %438 = vmatprep.subr.mxu0 0.0
      %439 = vmatpush1.msra.mxu0 %v402
      %440 = vmatprep.subr.mxu0 0.0
      %441 = vmatpush1.msra.mxu0 %v397
      %442 = vmatprep.subr.mxu0 0.0
      %443 = vmatpush1.msra.mxu0 %v392
      %444 = vmatprep.subr.mxu0 0.0
      %445 = vmatpush1.msra.mxu0 %v387
      %446 = vmatprep.subr.mxu0 0.0
      %447 = vmatpush1.msra.mxu0 %v382
      %448 = vmatprep.subr.mxu0 0.0
      %449 = vmatpush1.msra.mxu0 %v377
      %450 = vmatprep.subr.mxu0 0.0
      %451 = vmatpush1.msra.mxu0 %v372
      %452 = vmatprep.subr.mxu0 0.0
      %453 = vmatpush1.msra.mxu0 %v367
      %454 = vmatprep.subr.mxu0 0.0
      %455 = vmatpush1.msra.mxu0 %v362
      %456 = vmatprep.subr.mxu0 0.0
      %457 = vmatpush1.msra.mxu0 %v357
      %458 = vmatprep.subr.mxu0 0.0
      %459 = vmatpush2.msra.mxu0 0.0
      %460 = vmatprep.subr.mxu0 0.0
      %461 = vmatpush2.msra.mxu0 0.0
      %462 = vmatprep.subr.mxu0 0.0
      %463 = vmatpush2.msra.mxu0 0.0
      %464 = vmatprep.subr.mxu0 0.0
      %465 = vmatpush2.msra.mxu0 0.0
      %466 = vmatprep.subr.mxu0 0.0
      %467 = vmatpush2.msra.mxu0 0.0
      %468 = vmatprep.subr.mxu0 0.0
      %469 = vmatpush2.msra.mxu0 0.0
      %470 = vmatprep.subr.mxu0 0.0
      %471 = vmatpush2.msra.mxu0 0.0
      %472 = vmatprep.subr.mxu0 0.0
      %473 = vmatpush2.msra.mxu0 0.0
      %474 = vmatprep.subr.mxu0 0.0
      %475 = vmatpush2.msra.mxu0 0.0
      %476 = vmatprep.subr.mxu0 0.0
      %477 = vmatpush2.msra.mxu0 0.0
      %478 = vmatprep.subr.mxu0 0.0
      %479 = vmatpush2.msra.mxu0 0.0
      %480 = vmatprep.subr.mxu0 0.0
      %481 = vmatpush2.msra.mxu0 0.0
      %482 = vmatprep.subr.mxu0 0.0
      %483 = vmatpush2.msra.mxu0 0.0
      %484 = vmatprep.subr.mxu0 0.0
      %485 = vmatpush2.msra.mxu0 0.0
      %486 = vmatprep.subr.mxu0 0.0
      %487 = vmatpush2.msra.mxu0 0.0
      %488 = vmatprep.subr.mxu0 0.0
      %489 = vmatpush2.msra.mxu0 0.0
      %490 = vmatprep.mubr.f32.mxu0 0.0
      %491 = vmatmul.mubr.f32.gmra.mxu0 %v412
      %v492 = vpop.f32.mrf.mxu0
      %v493 = vadd.f32 0.0, %v492
      %v494 = vpop.f32.mrf.mxu0
      %495 = vmatprep.mubr.f32.mxu0 0.0
      %496 = vmatmul.mubr.f32.gmra.mxu0 %v415
      %v497 = vpop.f32.mrf.mxu0
      %v498 = vadd.f32 0.0, %v497
      %v499 = vpop.f32.mrf.mxu0
      %500 = vmatprep.mubr.f32.mxu0 0.0
      %501 = vmatmul.mubr.f32.gmra.mxu0 %v418
      %v502 = vpop.f32.mrf.mxu0
      %v503 = vadd.f32 0.0, %v502
      %v504 = vpop.f32.mrf.mxu0
      %505 = vmatprep.mubr.f32.mxu0 0.0
      %506 = vmatmul.mubr.f32.gmra.mxu0 %v421
      %v507 = vpop.f32.mrf.mxu0
      %v508 = vadd.f32 0.0, %v507
      %v509 = vpop.f32.mrf.mxu0
      %510 = vmatprep.mubr.f32.mxu0 0.0
      %511 = vmatmul.mubr.f32.gmra.mxu0 %v424
      %v512 = vpop.f32.mrf.mxu0
      %v513 = vadd.f32 0.0, %v512
      %v514 = vpop.f32.mrf.mxu0
      %515 = vdwg.mxu0
      %v516 = vmul.f32 %v493, %v493
      %v517 = vmul.f32 %v498, %v498
      %v518 = vmul.f32 %v493, %v498
      %v519 = vsub.f32 %v503, %v516
      %v520 = vsub.f32 %v508, %v517
      %v521 = vsub.f32 %v513, %v518
      %v522 = vmul.f32 %v518, 2.0
      %v523 = vadd.f32 %v522, 0.0001
      %v524 = vmul.f32 %v521, 2.0
      %v525 = vadd.f32 %v524, 0.0009
      %v526 = vmul.f32 %v523, %v525
      %v527 = vadd.f32 %v516, %v517
      %v528 = vadd.f32 %v527, 0.0001
      %v529 = vadd.f32 %v519, %v520
      %v530 = vadd.f32 %v529, 0.0009
      %v531 = vmul.f32 %v528, %v530
      %v532 = vrcp.pop %v531
      %v533 = vmul.f32 %v526, %v532
      %v534 = vlaneseq
      %v535 = vshrl.u32 %v534, 7
      %vm536 = vcmp.lt.s32.totalorder %v535, 6
      %v537 = vsel %vm536, 1, 0
      %vm538 = vcmp.eq.s32.totalorder %v537, 1
      %v539 = vsel %vm538, %v533, 0.0
      %v540 = vld [vmem:[%s4] sm:$0xff]
      %v541 = vld [vmem:[%s4 + $0x8] sm:$0xff]
      %v542 = vld [vmem:[%s4 + $0x10] sm:$0xff]
      %vm543 = vcmask 195584
      %v545 = vsel %vm543, %v539, 0
      %547 = vmatprep.subr.mxu0 0.0
      %548 = vmatpush1.msra.mxu0 0.0
      %549 = vmatprep.subr.mxu0 0.0
      %550 = vmatpush1.msra.mxu0 0.0
      %551 = vmatprep.subr.mxu0 0.0
      %552 = vmatpush1.msra.mxu0 0.0
      %553 = vmatprep.subr.mxu0 0.0
      %554 = vmatpush1.msra.mxu0 0.0
      %555 = vmatprep.subr.mxu0 0.0
      %556 = vmatpush1.msra.mxu0 0.0
      %557 = vmatprep.subr.mxu0 0.0
      %558 = vmatpush1.msra.mxu0 0.0
      %559 = vmatprep.subr.mxu0 0.0
      %560 = vmatpush1.msra.mxu0 0.0
      %561 = vmatprep.subr.mxu0 0.0
      %562 = vmatpush1.msra.mxu0 0.0
      %563 = vmatprep.subr.mxu0 0.0
      %564 = vmatpush1.msra.mxu0 0.0
      %565 = vmatprep.subr.mxu0 0.0
      %566 = vmatpush1.msra.mxu0 0.0
      %567 = vmatprep.subr.mxu0 0.0
      %568 = vmatpush1.msra.mxu0 0.0
      %569 = vmatprep.subr.mxu0 0.0
      %570 = vmatpush1.msra.mxu0 0.0
      %571 = vmatprep.subr.mxu0 0.0
      %572 = vmatpush1.msra.mxu0 0.0
      %573 = vmatprep.subr.mxu0 0.0
      %574 = vmatpush1.msra.mxu0 %v542
      %575 = vmatprep.subr.mxu0 0.0
      %576 = vmatpush1.msra.mxu0 %v541
      %577 = vmatprep.subr.mxu0 0.0
      %578 = vmatpush1.msra.mxu0 %v540
      %579 = vmatprep.subr.mxu0 0.0
      %580 = vmatpush2.msra.mxu0 0.0
      %581 = vmatprep.subr.mxu0 0.0
      %582 = vmatpush2.msra.mxu0 0.0
      %583 = vmatprep.subr.mxu0 0.0
      %584 = vmatpush2.msra.mxu0 0.0
      %585 = vmatprep.subr.mxu0 0.0
      %586 = vmatpush2.msra.mxu0 0.0
      %587 = vmatprep.subr.mxu0 0.0
      %588 = vmatpush2.msra.mxu0 0.0
      %589 = vmatprep.subr.mxu0 0.0
      %590 = vmatpush2.msra.mxu0 0.0
      %591 = vmatprep.subr.mxu0 0.0
      %592 = vmatpush2.msra.mxu0 0.0
      %593 = vmatprep.subr.mxu0 0.0
      %594 = vmatpush2.msra.mxu0 0.0
      %595 = vmatprep.subr.mxu0 0.0
      %596 = vmatpush2.msra.mxu0 0.0
      %597 = vmatprep.subr.mxu0 0.0
      %598 = vmatpush2.msra.mxu0 0.0
      %599 = vmatprep.subr.mxu0 0.0
      %600 = vmatpush2.msra.mxu0 0.0
      %601 = vmatprep.subr.mxu0 0.0
      %602 = vmatpush2.msra.mxu0 0.0
      %603 = vmatprep.subr.mxu0 0.0
      %604 = vmatpush2.msra.mxu0 0.0
      %605 = vmatprep.subr.mxu0 0.0
      %606 = vmatpush2.msra.mxu0 0.0
      %607 = vmatprep.subr.mxu0 0.0
      %608 = vmatpush2.msra.mxu0 0.0
      %609 = vmatprep.subr.mxu0 0.0
      %610 = vmatpush2.msra.mxu0 0.0
      %611 = vmatprep.mubr.f32.mxu0 0.0
      %612 = vmatmul.mubr.f32.gmra.mxu0 %v545
      %v613 = vpop.f32.mrf.mxu0
      %v614 = vadd.f32 0.0, %v613
      %v615 = vpop.f32.mrf.mxu0
      %616 = vdwg.mxu0
      %v617 = vrot.slane %v614, 4
      %v618 = vadd.f32 %v614, %v617
      %v619 = vrot.slane %v618, 2
      %v620 = vadd.f32 %v618, %v619
      %v621 = vrot.slane %v620, 1
      %v622 = vadd.f32 %v620, %v621
      %623 = vst [vmem:[%s240] sm:$0x1] %v622
      %p624 = scmp.lt.s32.totalorder %s16, 1
      %s625 = scalar_select %p624, %s16, 1
      %s626 = scalar_lea.vmem %s5, %s625
      // Predicated region
      $region41: #{ssim_pallas.1} parent=39 // pred_check
        %p627 = pneg %p149
      $region42: #{ssim_pallas.1} parent=39 // pred_check_branch
        %629 = sbr.rel (%p627) target = $region44
      $region43: #{ssim_pallas.1} parent=39 // pred_region
        _
      $region44: #{ssim_pallas.1} parent=39 // pred_fallthru
        _
    $region40: #{ssim_pallas.1} parent=5 // pred_fallthru
      _
    %p630 = scmp.le.s32.totalorder 2, %s11
    // Predicated region
    $region45: #{ssim_pallas.1} parent=5 // pred_check
      %p631 = pneg %p630
    $region46: #{ssim_pallas.1} parent=5 // pred_check_branch
      %633 = sbr.rel (%p631) target = $region48
    $region47: #{ssim_pallas.1} parent=5 // pred_region
      %s634 = ssub.s32 %s11, 2
      // Predicated region
      $region49: #{ssim_pallas.1} parent=47 // pred_check
        %p635 = pneg %p155
      $region50: #{ssim_pallas.1} parent=47 // pred_check_branch
        %637 = sbr.rel (%p635) target = $region52
      $region51: #{ssim_pallas.1} parent=47 // pred_region
        %p638 = scmp.lt.s32.totalorder %s17, 1
        %s639 = scalar_select %p638, %s17, 1
        %s640 = scalar_lea.vmem %s5, %s639
      $region52: #{ssim_pallas.1} parent=47 // pred_fallthru
        _
    $region48: #{ssim_pallas.1} parent=5 // pred_fallthru
      _
  $region6: #{ssim_pallas.1} parent=0 // loop_footer
    %s15 = sadd.s32 1, %s11
  $region7: #{ssim_pallas.1} parent=0 // loop_footer_branch
    %10 = sbr.rel target = $region3
  $region8: #{ssim_pallas.1} parent=0 // loop_exit
    _

</llo_original>
